<compile_context>
chip_gen: v7x
topology: tpu7x:2x2x1
jax: 0.10.0
libtpu: 0.0.40
codegen_flags: <defaults>
</compile_context>

<pallas_src>
import functools

import jax
import jax.numpy as jnp
from jax import lax
from jax.experimental import pallas as pl
from jax.experimental.pallas import tpu as pltpu

EPS = 1e-5
SUBLANE = 8


def _round_up(n, m):
    return ((n + m - 1) // m) * m


def _full_spec(shape):
    # Single grid point, block == full array (exempt from the (8,128) tiling rule).
    return pl.BlockSpec(shape, lambda: (0,) * len(shape))


# ---------------------------------------------------------------------------
# Fused kernel builder
# ---------------------------------------------------------------------------
def _make_fused_kernel(num_bn_layers, num_classes, real_batch, padded_batch):
    """[Linear -> BN(batch stats) -> ReLU] x L  ->  Linear -> Softmax/Sigmoid."""
    use_softmax = num_classes > 2
    need_row_mask = padded_batch > real_batch
    inv_b = 1.0 / float(real_batch)

    def kernel(*refs):
        o_ref = refs[-1]
        y = refs[0][...]                              # (B_pad, in_f), f32
        idx = 1

        if need_row_mask:
            row = lax.broadcasted_iota(jnp.int32, (padded_batch, 1), 0)
            row_mask = (row < real_batch).astype(jnp.float32)

        for _ in range(num_bn_layers):
            w = refs[idx][...]                        # bf16 (in_f, out_f)
            b = refs[idx + 1][...]                    # f32  (1, out_f)
            g = refs[idx + 2][...]                    # f32  (1, out_f)
            be = refs[idx + 3][...]                   # f32  (1, out_f)
            idx += 4

            # Linear: bf16 MXU operands, f32 accumulation, f32 bias add.
            z = jnp.dot(y.astype(jnp.bfloat16), w,
                        preferred_element_type=jnp.float32) + b

            # BatchNorm1d training-mode stats: batch mean, biased variance.
            if need_row_mask:
                mean = jnp.sum(z * row_mask, axis=0, keepdims=True) * inv_b
                ctr = z - mean
                var = jnp.sum((ctr * ctr) * row_mask, axis=0, keepdims=True) * inv_b
            else:
                mean = jnp.mean(z, axis=0, keepdims=True)
                ctr = z - mean
                var = jnp.mean(ctr * ctr, axis=0, keepdims=True)

            # Folded BN + ReLU: per-feature scale/shift (one vreg), 2 full-width ops.
            inv_std = lax.rsqrt(var + EPS)
            scale = g * inv_std
            shift = be - mean * scale
            y = jnp.maximum(z * scale + shift, 0.0)

        w_out = refs[idx][...]                        # bf16 (hid, out_dim)
        b_out = refs[idx + 1][...]                    # f32  (1, out_dim)
        logits = jnp.dot(y.astype(jnp.bfloat16), w_out,
                         preferred_element_type=jnp.float32) + b_out

        if use_softmax:
            m = jnp.max(logits, axis=1, keepdims=True)
            e = jnp.exp(logits - m)
            denom = jnp.sum(e, axis=1, keepdims=True)
            o_ref[...] = e / denom                    # exact divide (f32)
        else:
            o_ref[...] = jax.nn.sigmoid(logits)

    return kernel


# ---------------------------------------------------------------------------
# Parameter construction (deterministic; mimics nn.Linear default init ranges,
# BatchNorm gamma=1 / beta=0).  Weights are stored pre-transposed (in_f, out_f),
# UNPADDED, in bfloat16 (MXU-native).  Biases / BN params stay f32.
# ---------------------------------------------------------------------------
def make_linear_params(key, in_f, out_f):
    kw, kb = jax.random.split(key)
    bound = 1.0 / (float(in_f) ** 0.5)
    w = jax.random.uniform(kw, (in_f, out_f), jnp.float32, -bound, bound)
    b = jax.random.uniform(kb, (1, out_f), jnp.float32, -bound, bound)
    return w.astype(jnp.bfloat16), b


def make_bn_params(out_f):
    gamma = jnp.ones((1, out_f), jnp.float32)
    beta = jnp.zeros((1, out_f), jnp.float32)
    return gamma, beta


def init_deep_classifier(key, input_shape, hidden_sizes, num_classes):
    out_dim = num_classes if num_classes > 2 else 1
    dims = [input_shape] + list(hidden_sizes) + [out_dim]
    keys = jax.random.split(key, len(hidden_sizes) + 1)

    layers = []
    for i in range(len(hidden_sizes)):
        w, b = make_linear_params(keys[i], dims[i], dims[i + 1])
        g, be = make_bn_params(dims[i + 1])
        layers.append((w, b, g, be))
    w_out, b_out = make_linear_params(keys[-1], dims[-2], dims[-1])

    params = {"layers": layers, "out": (w_out, b_out)}
    return params, out_dim


# ---------------------------------------------------------------------------
# Single fused pallas_call wrapper
# ---------------------------------------------------------------------------
@functools.partial(jax.jit, static_argnames=("num_classes", "out_dim"))
def deep_classifier_forward(params, x, *, num_classes, out_dim):
    B, K = x.shape
    B_pad = _round_up(B, SUBLANE)   # sublane-aligned rows -> unmasked stores
    x_f32 = x.astype(jnp.float32)
    if B_pad > B:
        x_f32 = jnp.zeros((B_pad, K), jnp.float32).at[:B, :].set(x_f32)

    flat_inputs = [x_f32]
    for (w, b, g, be) in params["layers"]:
        flat_inputs += [w, b, g, be]
    w_out, b_out = params["out"]
    flat_inputs += [w_out, b_out]

    kernel = _make_fused_kernel(len(params["layers"]), num_classes, B, B_pad)

    out = pl.pallas_call(
        kernel,
        out_shape=jax.ShapeDtypeStruct((B_pad, out_dim), jnp.float32),
        in_specs=[_full_spec(a.shape) for a in flat_inputs],
        out_specs=_full_spec((B_pad, out_dim)),
        compiler_params=pltpu.CompilerParams(vmem_limit_bytes=32 * 1024 * 1024),
    )(*flat_inputs)

    return out[:B]


if __name__ == "__main__":
    # Small shapes consistent with the module (flat feature-vector input).
    batch = 8
    input_shape = 16
    hidden_sizes = (32, 32)
    num_classes = 10

    key = jax.random.PRNGKey(0)
    k_params, k_x = jax.random.split(key)
    params, out_dim = init_deep_classifier(k_params, input_shape, hidden_sizes,
                                           num_classes)
    x = jax.random.normal(k_x, (batch, input_shape), jnp.float32)

    out = deep_classifier_forward(params, x, num_classes=num_classes, out_dim=out_dim)
    out = jax.block_until_ready(out)

    assert out.shape == (batch, num_classes)
    # Exact softmax divide: rows sum to 1 within f32 rounding.
    assert bool(jnp.allclose(jnp.sum(out, axis=1), 1.0, atol=1e-3))
    assert bool(jnp.all(out >= 0.0))
    print("KERNEL_OK")
</pallas_src>

<mosaic_0001>
module attributes {stable_mosaic.version = 11 : i64} {
  func.func @kernel(%arg0: memref<8x16xf32, #tpu.memory_space<vmem>>, %arg1: memref<16x32xbf16, #tpu.memory_space<vmem>>, %arg2: memref<1x32xf32, #tpu.memory_space<vmem>>, %arg3: memref<1x32xf32, #tpu.memory_space<vmem>>, %arg4: memref<1x32xf32, #tpu.memory_space<vmem>>, %arg5: memref<32x32xbf16, #tpu.memory_space<vmem>>, %arg6: memref<1x32xf32, #tpu.memory_space<vmem>>, %arg7: memref<1x32xf32, #tpu.memory_space<vmem>>, %arg8: memref<1x32xf32, #tpu.memory_space<vmem>>, %arg9: memref<32x10xbf16, #tpu.memory_space<vmem>>, %arg10: memref<1x10xf32, #tpu.memory_space<vmem>>, %arg11: memref<8x10xf32, #tpu.memory_space<vmem>>) attributes {dimension_semantics = [], scalar_prefetch = 0 : i64, scratch_operands = 0 : i64, tpu.core_type = #tpu.core_type<tc>} {
    %c0 = arith.constant 0 : index
    %c0_0 = arith.constant 0 : index
    %0 = vector.load %arg0[%c0, %c0_0] : memref<8x16xf32, #tpu.memory_space<vmem>>, vector<8x16xf32>
    %c0_1 = arith.constant 0 : index
    %c0_2 = arith.constant 0 : index
    %1 = vector.load %arg1[%c0_1, %c0_2] : memref<16x32xbf16, #tpu.memory_space<vmem>>, vector<16x32xbf16>
    %c0_3 = arith.constant 0 : index
    %c0_4 = arith.constant 0 : index
    %2 = vector.load %arg2[%c0_3, %c0_4] : memref<1x32xf32, #tpu.memory_space<vmem>>, vector<1x32xf32>
    %c0_5 = arith.constant 0 : index
    %c0_6 = arith.constant 0 : index
    %3 = vector.load %arg3[%c0_5, %c0_6] : memref<1x32xf32, #tpu.memory_space<vmem>>, vector<1x32xf32>
    %c0_7 = arith.constant 0 : index
    %c0_8 = arith.constant 0 : index
    %4 = vector.load %arg4[%c0_7, %c0_8] : memref<1x32xf32, #tpu.memory_space<vmem>>, vector<1x32xf32>
    %5 = arith.truncf %0 : vector<8x16xf32> to vector<8x16xbf16>
    %cst = arith.constant dense<0.000000e+00> : vector<8x32xf32>
    %6 = tpu.matmul %5, %1, %cst {dimension_numbers = #tpu.dot_dimension_numbers<[1], [0], [0], [1], [0, 0, 1, 1], [], []>} : vector<8x16xbf16>, vector<16x32xbf16>, vector<8x32xf32> -> vector<8x32xf32>
    %7 = vector.broadcast %2 : vector<1x32xf32> to vector<8x32xf32>
    %8 = arith.addf %6, %7 : vector<8x32xf32>
    %cst_9 = arith.constant dense<0.000000e+00> : vector<32xf32>
    %9 = vector.multi_reduction <add>, %8, %cst_9 [0] : vector<8x32xf32> to vector<32xf32>
    %10 = vector.shape_cast %9 : vector<32xf32> to vector<1x32xf32>
    %cst_10 = arith.constant 8.000000e+00 : f32
    %11 = vector.broadcast %cst_10 : f32 to vector<1x32xf32>
    %12 = arith.divf %10, %11 : vector<1x32xf32>
    %13 = vector.broadcast %12 : vector<1x32xf32> to vector<8x32xf32>
    %14 = arith.subf %8, %13 : vector<8x32xf32>
    %15 = arith.mulf %14, %14 : vector<8x32xf32>
    %cst_11 = arith.constant dense<0.000000e+00> : vector<32xf32>
    %16 = vector.multi_reduction <add>, %15, %cst_11 [0] : vector<8x32xf32> to vector<32xf32>
    %17 = vector.shape_cast %16 : vector<32xf32> to vector<1x32xf32>
    %cst_12 = arith.constant 8.000000e+00 : f32
    %18 = vector.broadcast %cst_12 : f32 to vector<1x32xf32>
    %19 = arith.divf %17, %18 : vector<1x32xf32>
    %cst_13 = arith.constant 9.99999974E-6 : f32
    %20 = vector.broadcast %cst_13 : f32 to vector<1x32xf32>
    %21 = arith.addf %19, %20 : vector<1x32xf32>
    %22 = math.rsqrt %21 : vector<1x32xf32>
    %23 = arith.mulf %3, %22 : vector<1x32xf32>
    %24 = arith.mulf %12, %23 : vector<1x32xf32>
    %25 = arith.subf %4, %24 : vector<1x32xf32>
    %26 = vector.broadcast %23 : vector<1x32xf32> to vector<8x32xf32>
    %27 = arith.mulf %8, %26 : vector<8x32xf32>
    %28 = vector.broadcast %25 : vector<1x32xf32> to vector<8x32xf32>
    %29 = arith.addf %27, %28 : vector<8x32xf32>
    %cst_14 = arith.constant 0.000000e+00 : f32
    %30 = vector.broadcast %cst_14 : f32 to vector<8x32xf32>
    %31 = arith.maximumf %29, %30 : vector<8x32xf32>
    %c0_15 = arith.constant 0 : index
    %c0_16 = arith.constant 0 : index
    %32 = vector.load %arg5[%c0_15, %c0_16] : memref<32x32xbf16, #tpu.memory_space<vmem>>, vector<32x32xbf16>
    %c0_17 = arith.constant 0 : index
    %c0_18 = arith.constant 0 : index
    %33 = vector.load %arg6[%c0_17, %c0_18] : memref<1x32xf32, #tpu.memory_space<vmem>>, vector<1x32xf32>
    %c0_19 = arith.constant 0 : index
    %c0_20 = arith.constant 0 : index
    %34 = vector.load %arg7[%c0_19, %c0_20] : memref<1x32xf32, #tpu.memory_space<vmem>>, vector<1x32xf32>
    %c0_21 = arith.constant 0 : index
    %c0_22 = arith.constant 0 : index
    %35 = vector.load %arg8[%c0_21, %c0_22] : memref<1x32xf32, #tpu.memory_space<vmem>>, vector<1x32xf32>
    %36 = arith.truncf %31 : vector<8x32xf32> to vector<8x32xbf16>
    %cst_23 = arith.constant dense<0.000000e+00> : vector<8x32xf32>
    %37 = tpu.matmul %36, %32, %cst_23 {dimension_numbers = #tpu.dot_dimension_numbers<[1], [0], [0], [1], [0, 0, 1, 1], [], []>} : vector<8x32xbf16>, vector<32x32xbf16>, vector<8x32xf32> -> vector<8x32xf32>
    %38 = vector.broadcast %33 : vector<1x32xf32> to vector<8x32xf32>
    %39 = arith.addf %37, %38 : vector<8x32xf32>
    %cst_24 = arith.constant dense<0.000000e+00> : vector<32xf32>
    %40 = vector.multi_reduction <add>, %39, %cst_24 [0] : vector<8x32xf32> to vector<32xf32>
    %41 = vector.shape_cast %40 : vector<32xf32> to vector<1x32xf32>
    %cst_25 = arith.constant 8.000000e+00 : f32
    %42 = vector.broadcast %cst_25 : f32 to vector<1x32xf32>
    %43 = arith.divf %41, %42 : vector<1x32xf32>
    %44 = vector.broadcast %43 : vector<1x32xf32> to vector<8x32xf32>
    %45 = arith.subf %39, %44 : vector<8x32xf32>
    %46 = arith.mulf %45, %45 : vector<8x32xf32>
    %cst_26 = arith.constant dense<0.000000e+00> : vector<32xf32>
    %47 = vector.multi_reduction <add>, %46, %cst_26 [0] : vector<8x32xf32> to vector<32xf32>
    %48 = vector.shape_cast %47 : vector<32xf32> to vector<1x32xf32>
    %cst_27 = arith.constant 8.000000e+00 : f32
    %49 = vector.broadcast %cst_27 : f32 to vector<1x32xf32>
    %50 = arith.divf %48, %49 : vector<1x32xf32>
    %cst_28 = arith.constant 9.99999974E-6 : f32
    %51 = vector.broadcast %cst_28 : f32 to vector<1x32xf32>
    %52 = arith.addf %50, %51 : vector<1x32xf32>
    %53 = math.rsqrt %52 : vector<1x32xf32>
    %54 = arith.mulf %34, %53 : vector<1x32xf32>
    %55 = arith.mulf %43, %54 : vector<1x32xf32>
    %56 = arith.subf %35, %55 : vector<1x32xf32>
    %57 = vector.broadcast %54 : vector<1x32xf32> to vector<8x32xf32>
    %58 = arith.mulf %39, %57 : vector<8x32xf32>
    %59 = vector.broadcast %56 : vector<1x32xf32> to vector<8x32xf32>
    %60 = arith.addf %58, %59 : vector<8x32xf32>
    %cst_29 = arith.constant 0.000000e+00 : f32
    %61 = vector.broadcast %cst_29 : f32 to vector<8x32xf32>
    %62 = arith.maximumf %60, %61 : vector<8x32xf32>
    %c0_30 = arith.constant 0 : index
    %c0_31 = arith.constant 0 : index
    %63 = vector.load %arg9[%c0_30, %c0_31] : memref<32x10xbf16, #tpu.memory_space<vmem>>, vector<32x10xbf16>
    %c0_32 = arith.constant 0 : index
    %c0_33 = arith.constant 0 : index
    %64 = vector.load %arg10[%c0_32, %c0_33] : memref<1x10xf32, #tpu.memory_space<vmem>>, vector<1x10xf32>
    %65 = arith.truncf %62 : vector<8x32xf32> to vector<8x32xbf16>
    %cst_34 = arith.constant dense<0.000000e+00> : vector<8x10xf32>
    %66 = tpu.matmul %65, %63, %cst_34 {dimension_numbers = #tpu.dot_dimension_numbers<[1], [0], [0], [1], [0, 0, 1, 1], [], []>} : vector<8x32xbf16>, vector<32x10xbf16>, vector<8x10xf32> -> vector<8x10xf32>
    %67 = vector.broadcast %64 : vector<1x10xf32> to vector<8x10xf32>
    %68 = arith.addf %66, %67 : vector<8x10xf32>
    %cst_35 = arith.constant dense<0xFF800000> : vector<8xf32>
    %69 = vector.multi_reduction <maximumf>, %68, %cst_35 [1] : vector<8x10xf32> to vector<8xf32>
    %70 = vector.shape_cast %69 : vector<8xf32> to vector<8x1xf32>
    %71 = vector.broadcast %70 : vector<8x1xf32> to vector<8x10xf32>
    %72 = arith.subf %68, %71 : vector<8x10xf32>
    %73 = math.exp %72 : vector<8x10xf32>
    %cst_36 = arith.constant dense<0.000000e+00> : vector<8xf32>
    %74 = vector.multi_reduction <add>, %73, %cst_36 [1] : vector<8x10xf32> to vector<8xf32>
    %75 = vector.shape_cast %74 : vector<8xf32> to vector<8x1xf32>
    %76 = vector.broadcast %75 : vector<8x1xf32> to vector<8x10xf32>
    %77 = arith.divf %73, %76 : vector<8x10xf32>
    %c0_37 = arith.constant 0 : index
    %c0_38 = arith.constant 0 : index
    %78 = vector.load %arg11[%c0_37, %c0_38] : memref<8x10xf32, #tpu.memory_space<vmem>>, vector<8x10xf32>
    tpu.vector_store %arg11[%c0_37, %c0_38], %77 {strides = array<i32>} : memref<8x10xf32, #tpu.memory_space<vmem>>, vector<8x10xf32>,
    return
  }
}

</mosaic_0001>

<llo_original>
// kernel: deep_classifier_forward.1
$region0: #{deep_classifier_forward.1}
  #allocation0 [shape = 'u32[]', space=smem, size = 0x4, offset = 0x4, fixed_abs, tag = 'smem constant byte address 0x4 - core index']
  #allocation1 [shape = 'u32[144,128]{1,0:T(1,128)}', space=vmem, size = 0x12000, scoped, tag = 'internal scratch']
  %s0 = inlined_call_operand.vmem [shape: f32[8,16], index: 0, kind: input, shape index: {}]
  %s1 = inlined_call_operand.hbm [shape: bf16[16,32], index: 1, kind: input, shape index: {}]
  %s2 = inlined_call_operand.vmem [shape: f32[1,32], index: 2, kind: input, shape index: {}]
  %s3 = inlined_call_operand.vmem [shape: f32[1,32], index: 3, kind: input, shape index: {}]
  %s4 = inlined_call_operand.vmem [shape: f32[1,32], index: 4, kind: input, shape index: {}]
  %s5 = inlined_call_operand.vmem [shape: bf16[32,32], index: 5, kind: input, shape index: {}]
  %s6 = inlined_call_operand.vmem [shape: f32[1,32], index: 6, kind: input, shape index: {}]
  %s7 = inlined_call_operand.vmem [shape: f32[1,32], index: 7, kind: input, shape index: {}]
  %s8 = inlined_call_operand.vmem [shape: f32[1,32], index: 8, kind: input, shape index: {}]
  %s9 = inlined_call_operand.vmem [shape: bf16[32,10], index: 9, kind: input, shape index: {}]
  %s10 = inlined_call_operand.vmem [shape: f32[1,10], index: 10, kind: input, shape index: {}]
  %s11 = inlined_call_operand.hbm [shape: f32[8,10], index: 11, kind: output, shape index: {}]
  %s12 = sld [smem:[#allocation0]]
  $region58: #{deep_classifier_forward.1} parent=0
    _
  %s14 = ssub.s32 1, %s12
  %s15 = scalar_select 0, %s14, %s12
  $region1: #{deep_classifier_forward.1} parent=0
    #allocation2 [shape = 'u8[4096]{0}', space=vmem, size = 0x1000, scoped, tag = 'input window, operand 1, single buffered']
    #allocation3 [shape = 's32[1]{0}', space=sflag, size = 0x4, scoped, tag = 'scoped memory for deep_classifier_forward.1']
    #allocation4 [shape = 's32[1]{0}', space=sflag, size = 0x4, scoped, tag = 'scoped memory for deep_classifier_forward.1']
    #allocation5 [shape = 'u8[4096]{0}', space=vmem, size = 0x1000, scoped, tag = 'output window, operand 0, single buffered']
    %16 = vsyncpa [#allocation3], 0
    %17 = vsyncpa [#allocation4], 0
    // Predicated region
    $region2: #{deep_classifier_forward.1} parent=1 // pred_check
      _
    $region3: #{deep_classifier_forward.1} parent=1 // pred_check_branch
      %19 = sbr.rel (0) target = $region5
    $region4: #{deep_classifier_forward.1} parent=1 // pred_region
      _
    $region5: #{deep_classifier_forward.1} parent=1 // pred_fallthru
      _
    // Predicated region
    $region6: #{deep_classifier_forward.1} parent=1 // pred_check
      _
    $region7: #{deep_classifier_forward.1} parent=1 // pred_check_branch
      %21 = sbr.rel (0) target = $region9
    $region8: #{deep_classifier_forward.1} parent=1 // pred_region
      %s23 = ssub.s32 128, 128
      %24 = vsyncadd [#allocation3], %s23
      %s25 = sshll.u32 [#allocation2], 4
      %s26 = int_to_ptr.vmem [resolvable:$true] %s25
      %31 = dma.hbm_to_vmem [thread:$0]  %s1, 128, %s26, [#allocation3], 64, 64, 4
    $region9: #{deep_classifier_forward.1} parent=1 // pred_fallthru
      _
    // Predicated region
    $region10: #{deep_classifier_forward.1} parent=1 // pred_check
      _
    $region11: #{deep_classifier_forward.1} parent=1 // pred_check_branch
      %33 = sbr.rel (0) target = $region13
    $region12: #{deep_classifier_forward.1} parent=1 // pred_region
      _
    $region13: #{deep_classifier_forward.1} parent=1 // pred_fallthru
      _
    // Predicated region
    $region14: #{deep_classifier_forward.1} parent=1 // pred_check
      _
    $region15: #{deep_classifier_forward.1} parent=1 // pred_check_branch
      %35 = sbr.rel (0) target = $region17
    $region16: #{deep_classifier_forward.1} parent=1 // pred_region
      _
    $region17: #{deep_classifier_forward.1} parent=1 // pred_fallthru
      _
    // Predicated region
    $region18: #{deep_classifier_forward.1} parent=1 // pred_check
      _
    $region19: #{deep_classifier_forward.1} parent=1 // pred_check_branch
      %37 = sbr.rel (0) target = $region21
    $region20: #{deep_classifier_forward.1} parent=1 // pred_region
      _
    $region21: #{deep_classifier_forward.1} parent=1 // pred_fallthru
      _
    // Predicated region
    $region22: #{deep_classifier_forward.1} parent=1 // pred_check
      _
    $region23: #{deep_classifier_forward.1} parent=1 // pred_check_branch
      %39 = sbr.rel (0) target = $region25
    $region24: #{deep_classifier_forward.1} parent=1 // pred_region
      _
    $region25: #{deep_classifier_forward.1} parent=1 // pred_fallthru
      _
    // Predicated region
    $region26: #{deep_classifier_forward.1} parent=1 // pred_check
      _
    $region27: #{deep_classifier_forward.1} parent=1 // pred_check_branch
      %41 = sbr.rel (0) target = $region29
    $region28: #{deep_classifier_forward.1} parent=1 // pred_region
      _
    $region29: #{deep_classifier_forward.1} parent=1 // pred_fallthru
      _
    // Predicated region
    $region30: #{deep_classifier_forward.1} parent=1 // pred_check
      _
    $region31: #{deep_classifier_forward.1} parent=1 // pred_check_branch
      %43 = sbr.rel (0) target = $region33
    $region32: #{deep_classifier_forward.1} parent=1 // pred_region
      _
    $region33: #{deep_classifier_forward.1} parent=1 // pred_fallthru
      _
    // Predicated region
    $region34: #{deep_classifier_forward.1} parent=1 // pred_check
      _
    $region35: #{deep_classifier_forward.1} parent=1 // pred_check_branch
      %45 = sbr.rel (0) target = $region37
    $region36: #{deep_classifier_forward.1} parent=1 // pred_region
      _
    $region37: #{deep_classifier_forward.1} parent=1 // pred_fallthru
      _
    // Predicated region
    $region38: #{deep_classifier_forward.1} parent=1 // pred_check
      _
    $region39: #{deep_classifier_forward.1} parent=1 // pred_check_branch
      %47 = sbr.rel (0) target = $region41
    $region40: #{deep_classifier_forward.1} parent=1 // pred_region
      _
    $region41: #{deep_classifier_forward.1} parent=1 // pred_fallthru
      _
    // Predicated region
    $region42: #{deep_classifier_forward.1} parent=1 // pred_check
      _
    $region43: #{deep_classifier_forward.1} parent=1 // pred_check_branch
      %49 = sbr.rel (0) target = $region45
    $region44: #{deep_classifier_forward.1} parent=1 // pred_region
      _
    $region45: #{deep_classifier_forward.1} parent=1 // pred_fallthru
      _
    // Predicated region
    $region46: #{deep_classifier_forward.1} parent=1 // pred_check
      _
    $region47: #{deep_classifier_forward.1} parent=1 // pred_check_branch
      %51 = sbr.rel (0) target = $region49
    $region48: #{deep_classifier_forward.1} parent=1 // pred_region
      %52 = dma.done [#allocation3], 128
    $region49: #{deep_classifier_forward.1} parent=1 // pred_fallthru
      _
    %v54 = vld [vmem:[%s0] sm:$0xff]
    %v55 = vld [vmem:[#allocation2] sm:$0xf]
    %v56 = vld [vmem:[#allocation2 + $0x4] sm:$0xf]
    %v57 = vld [vmem:[%s2] sm:$0x1]
    %v58 = vld [vmem:[%s3] sm:$0x1]
    %v59 = vld [vmem:[%s4] sm:$0x1]
    %v60 = vpack.c.bf16 %v54, %v54
    %v62 = vlaneseq
    %v63 = vshrl.u32 %v62, 7
    %v64 = vsub.s32 0, %v63
    %v65 = vrot.slane %v57, %v64
    %v69 = vunpack.c.l.b16 %v55
    %v70 = vunpack.c.l.b16 %v56
    %v71 = vpack.c.b16 %v70, %v69
    %vm73 = vcmask 130048
    %v75 = vsel %vm73, %v60, 0
    %77 = vmatprep.subr.bf16.mxu0 0
    %78 = vmatpush1.bf16.msra.mxu0 %v71
    %79 = vmatprep.subr.bf16.mxu0 0
    %80 = vmatpush1.bf16.msra.mxu0 0
    %81 = vmatprep.subr.bf16.mxu0 0
    %82 = vmatpush1.bf16.msra.mxu0 0
    %83 = vmatprep.subr.bf16.mxu0 0
    %84 = vmatpush1.bf16.msra.mxu0 0
    %85 = vmatprep.subr.bf16.mxu0 0
    %86 = vmatpush1.bf16.msra.mxu0 0
    %87 = vmatprep.subr.bf16.mxu0 0
    %88 = vmatpush1.bf16.msra.mxu0 0
    %89 = vmatprep.subr.bf16.mxu0 0
    %90 = vmatpush1.bf16.msra.mxu0 0
    %91 = vmatprep.subr.bf16.mxu0 0
    %92 = vmatpush1.bf16.msra.mxu0 0
    %93 = vmatprep.subr.bf16.mxu0 0
    %94 = vmatpush1.bf16.msra.mxu0 0
    %95 = vmatprep.subr.bf16.mxu0 0
    %96 = vmatpush1.bf16.msra.mxu0 0
    %97 = vmatprep.subr.bf16.mxu0 0
    %98 = vmatpush1.bf16.msra.mxu0 0
    %99 = vmatprep.subr.bf16.mxu0 0
    %100 = vmatpush1.bf16.msra.mxu0 0
    %101 = vmatprep.subr.bf16.mxu0 0
    %102 = vmatpush1.bf16.msra.mxu0 0
    %103 = vmatprep.subr.bf16.mxu0 0
    %104 = vmatpush1.bf16.msra.mxu0 0
    %105 = vmatprep.subr.bf16.mxu0 0
    %106 = vmatpush1.bf16.msra.mxu0 0
    %107 = vmatprep.subr.bf16.mxu0 0
    %108 = vmatpush1.bf16.msra.mxu0 0
    %109 = vmatprep.mubr.bf16.mxu0 0
    %110 = vmatmul.mubr.bf16.gmra.mrb[0].mxu0 %v75
    %v111 = vpop.f32.mrb[0].mxu0
    %v112 = vadd.f32 %v65, %v111
    %v113 = vpop.f32.mrb[0].mxu0
    %v114 = vpop.f32.mrb[0].mxu0
    %v115 = vpop.f32.mrb[0].mxu0
    %116 = vdwg.mxu0
    %vm117 = vcmask 261120
    %v118 = vsel %vm117, %v112, 0.0
    %v119 = vrot.slane %v118, 4
    %v120 = vadd.f32 %v118, %v119
    %v121 = vrot.slane %v120, 2
    %v122 = vadd.f32 %v120, %v121
    %v123 = vrot.slane %v122, 1
    %v124 = vadd.f32 %v122, %v123
    %v125 = vrcp.pop 8.0
    %v126 = vmul.f32 %v124, %v125
    %v127 = vsub.f32 %v112, %v126
    %v128 = vmul.f32 %v127, %v127
    %v129 = vsel %vm117, %v128, 0.0
    %v130 = vrot.slane %v129, 4
    %v131 = vadd.f32 %v129, %v130
    %v132 = vrot.slane %v131, 2
    %v133 = vadd.f32 %v131, %v132
    %v134 = vrot.slane %v133, 1
    %v135 = vadd.f32 %v133, %v134
    %v136 = vmul.f32 %v135, %v125
    %v137 = vadd.f32 %v136, 1e-05
    %v138 = vrsqrt.pop %v137
    %v139 = vmul.f32 %v58, %v138
    %v140 = vmul.f32 %v126, %v139
    %v141 = vsub.f32 %v59, %v140
    %v143 = vlaneseq
    %v144 = vshrl.u32 %v143, 7
    %v145 = vsub.s32 0, %v144
    %v146 = vrot.slane %v139, %v145
    %v148 = vmul.f32 %v112, %v146
    %v150 = vlaneseq
    %v151 = vshrl.u32 %v150, 7
    %v152 = vsub.s32 0, %v151
    %v153 = vrot.slane %v141, %v152
    %v155 = vadd.f32 %v148, %v153
    %v156 = vmax.f32 %v155, 0.0
    %v157 = vld [vmem:[%s5] sm:$0xf]
    %v158 = vld [vmem:[%s5 + $0x4] sm:$0xf]
    %v159 = vld [vmem:[%s5 + $0x8] sm:$0xf]
    %v160 = vld [vmem:[%s5 + $0xc] sm:$0xf]
    %v161 = vld [vmem:[%s6] sm:$0x1]
    %v162 = vld [vmem:[%s7] sm:$0x1]
    %v163 = vld [vmem:[%s8] sm:$0x1]
    %v164 = vpack.c.bf16 %v156, %v156
    %v166 = vlaneseq
    %v167 = vshrl.u32 %v166, 7
    %v168 = vsub.s32 0, %v167
    %v169 = vrot.slane %v161, %v168
    %v175 = vunpack.c.l.b16 %v157
    %v176 = vunpack.c.l.b16 %v158
    %v177 = vunpack.c.l.b16 %v159
    %v178 = vunpack.c.l.b16 %v160
    %v179 = vpack.c.b16 %v176, %v175
    %v180 = vpack.c.b16 %v178, %v177
    %v184 = vsel %vm117, %v164, 0
    %186 = vmatprep.subr.bf16.mxu0 0
    %187 = vmatpush1.bf16.msra.mxu0 %v179
    %188 = vmatprep.subr.bf16.mxu0 0
    %189 = vmatpush1.bf16.msra.mxu0 %v180
    %190 = vmatprep.subr.bf16.mxu0 0
    %191 = vmatpush1.bf16.msra.mxu0 0
    %192 = vmatprep.subr.bf16.mxu0 0
    %193 = vmatpush1.bf16.msra.mxu0 0
    %194 = vmatprep.subr.bf16.mxu0 0
    %195 = vmatpush1.bf16.msra.mxu0 0
    %196 = vmatprep.subr.bf16.mxu0 0
    %197 = vmatpush1.bf16.msra.mxu0 0
    %198 = vmatprep.subr.bf16.mxu0 0
    %199 = vmatpush1.bf16.msra.mxu0 0
    %200 = vmatprep.subr.bf16.mxu0 0
    %201 = vmatpush1.bf16.msra.mxu0 0
    %202 = vmatprep.subr.bf16.mxu0 0
    %203 = vmatpush1.bf16.msra.mxu0 0
    %204 = vmatprep.subr.bf16.mxu0 0
    %205 = vmatpush1.bf16.msra.mxu0 0
    %206 = vmatprep.subr.bf16.mxu0 0
    %207 = vmatpush1.bf16.msra.mxu0 0
    %208 = vmatprep.subr.bf16.mxu0 0
    %209 = vmatpush1.bf16.msra.mxu0 0
    %210 = vmatprep.subr.bf16.mxu0 0
    %211 = vmatpush1.bf16.msra.mxu0 0
    %212 = vmatprep.subr.bf16.mxu0 0
    %213 = vmatpush1.bf16.msra.mxu0 0
    %214 = vmatprep.subr.bf16.mxu0 0
    %215 = vmatpush1.bf16.msra.mxu0 0
    %216 = vmatprep.subr.bf16.mxu0 0
    %217 = vmatpush1.bf16.msra.mxu0 0
    %218 = vmatprep.mubr.bf16.mxu0 0
    %219 = vmatmul.mubr.bf16.gmra.mrb[0].mxu0 %v184
    %v220 = vpop.f32.mrb[0].mxu0
    %v221 = vadd.f32 %v169, %v220
    %v222 = vpop.f32.mrb[0].mxu0
    %v223 = vpop.f32.mrb[0].mxu0
    %v224 = vpop.f32.mrb[0].mxu0
    %225 = vdwg.mxu0
    %v226 = vsel %vm117, %v221, 0.0
    %v227 = vrot.slane %v226, 4
    %v228 = vadd.f32 %v226, %v227
    %v229 = vrot.slane %v228, 2
    %v230 = vadd.f32 %v228, %v229
    %v231 = vrot.slane %v230, 1
    %v232 = vadd.f32 %v230, %v231
    %v233 = vmul.f32 %v232, %v125
    %v234 = vsub.f32 %v221, %v233
    %v235 = vmul.f32 %v234, %v234
    %v236 = vsel %vm117, %v235, 0.0
    %v237 = vrot.slane %v236, 4
    %v238 = vadd.f32 %v236, %v237
    %v239 = vrot.slane %v238, 2
    %v240 = vadd.f32 %v238, %v239
    %v241 = vrot.slane %v240, 1
    %v242 = vadd.f32 %v240, %v241
    %v243 = vmul.f32 %v242, %v125
    %v244 = vadd.f32 %v243, 1e-05
    %v245 = vrsqrt.pop %v244
    %v246 = vmul.f32 %v162, %v245
    %v247 = vmul.f32 %v233, %v246
    %v248 = vsub.f32 %v163, %v247
    %v250 = vlaneseq
    %v251 = vshrl.u32 %v250, 7
    %v252 = vsub.s32 0, %v251
    %v253 = vrot.slane %v246, %v252
    %v255 = vmul.f32 %v221, %v253
    %v257 = vlaneseq
    %v258 = vshrl.u32 %v257, 7
    %v259 = vsub.s32 0, %v258
    %v260 = vrot.slane %v248, %v259
    %v262 = vadd.f32 %v255, %v260
    %v263 = vmax.f32 %v262, 0.0
    %v264 = vld [vmem:[%s9] sm:$0xf]
    %v265 = vld [vmem:[%s9 + $0x4] sm:$0xf]
    %v266 = vld [vmem:[%s9 + $0x8] sm:$0xf]
    %v267 = vld [vmem:[%s9 + $0xc] sm:$0xf]
    %v268 = vld [vmem:[%s10] sm:$0x1]
    %v269 = vpack.c.bf16 %v263, %v263
    %v271 = vlaneseq
    %v272 = vshrl.u32 %v271, 7
    %v273 = vsub.s32 0, %v272
    %v274 = vrot.slane %v268, %v273
    %v280 = vunpack.c.l.b16 %v264
    %v281 = vunpack.c.l.b16 %v265
    %v282 = vunpack.c.l.b16 %v266
    %v283 = vunpack.c.l.b16 %v267
    %v284 = vpack.c.b16 %v281, %v280
    %v285 = vpack.c.b16 %v283, %v282
    %v289 = vsel %vm117, %v269, 0
    %291 = vmatprep.subr.bf16.mxu0 0
    %292 = vmatpush1.bf16.msra.mxu0 %v284
    %293 = vmatprep.subr.bf16.mxu0 0
    %294 = vmatpush1.bf16.msra.mxu0 %v285
    %295 = vmatprep.subr.bf16.mxu0 0
    %296 = vmatpush1.bf16.msra.mxu0 0
    %297 = vmatprep.subr.bf16.mxu0 0
    %298 = vmatpush1.bf16.msra.mxu0 0
    %299 = vmatprep.subr.bf16.mxu0 0
    %300 = vmatpush1.bf16.msra.mxu0 0
    %301 = vmatprep.subr.bf16.mxu0 0
    %302 = vmatpush1.bf16.msra.mxu0 0
    %303 = vmatprep.subr.bf16.mxu0 0
    %304 = vmatpush1.bf16.msra.mxu0 0
    %305 = vmatprep.subr.bf16.mxu0 0
    %306 = vmatpush1.bf16.msra.mxu0 0
    %307 = vmatprep.subr.bf16.mxu0 0
    %308 = vmatpush1.bf16.msra.mxu0 0
    %309 = vmatprep.subr.bf16.mxu0 0
    %310 = vmatpush1.bf16.msra.mxu0 0
    %311 = vmatprep.subr.bf16.mxu0 0
    %312 = vmatpush1.bf16.msra.mxu0 0
    %313 = vmatprep.subr.bf16.mxu0 0
    %314 = vmatpush1.bf16.msra.mxu0 0
    %315 = vmatprep.subr.bf16.mxu0 0
    %316 = vmatpush1.bf16.msra.mxu0 0
    %317 = vmatprep.subr.bf16.mxu0 0
    %318 = vmatpush1.bf16.msra.mxu0 0
    %319 = vmatprep.subr.bf16.mxu0 0
    %320 = vmatpush1.bf16.msra.mxu0 0
    %321 = vmatprep.subr.bf16.mxu0 0
    %322 = vmatpush1.bf16.msra.mxu0 0
    %323 = vmatprep.mubr.bf16.mxu0 0
    %324 = vmatmul.mubr.bf16.gmra.mrb[0].mxu0 %v289
    %v325 = vpop.f32.mrb[0].mxu0
    %v326 = vadd.f32 %v274, %v325
    %v327 = vpop.f32.mrb[0].mxu0
    %v328 = vpop.f32.mrb[0].mxu0
    %v329 = vpop.f32.mrb[0].mxu0
    %330 = vdwg.mxu0
    %vm331 = vcmask 80896
    %v332 = vsel %vm331, %v326, -inf
    %333 = vmax.xlane.f32.xlu0 %v332
    %v334 = vpop.xlane.xlu0 %333
    %v335 = vsub.f32 %v326, %v334
    %v336 = vmul.f32 %v335, 1.442695
    %v337 = vpow.pop %v336
    %v338 = vsel %vm331, %v337, 0.0
    %339 = vadd.xlane.f32.xlu0 %v338
    %v340 = vpop.xlane.xlu0 %339
    %v341 = vrcp.pop %v340
    %v342 = vmul.f32 %v337, %v341
    %343 = vst.msk [vmem:[#allocation5] sm:$0xff] %vm331, %v342
    // Predicated region
    $region50: #{deep_classifier_forward.1} parent=1 // pred_check
      _
    $region51: #{deep_classifier_forward.1} parent=1 // pred_check_branch
      %345 = sbr.rel (0) target = $region53
    $region52: #{deep_classifier_forward.1} parent=1 // pred_region
      %s347 = ssub.s32 128, 128
      %348 = vsyncadd [#allocation4], %s347
      %s350 = sshll.u32 [#allocation5], 4
      %s351 = int_to_ptr.vmem [resolvable:$true] %s350
      %353 = dma.vmem_to_hbm [thread:$0]  %s351, 128, %s11, [#allocation4]
    $region53: #{deep_classifier_forward.1} parent=1 // pred_fallthru
      _
    // Predicated region
    $region54: #{deep_classifier_forward.1} parent=1 // pred_check
      _
    $region55: #{deep_classifier_forward.1} parent=1 // pred_check_branch
      %355 = sbr.rel (0) target = $region57
    $region56: #{deep_classifier_forward.1} parent=1 // pred_region
      %356 = dma.done [#allocation4], 128
    $region57: #{deep_classifier_forward.1} parent=1 // pred_fallthru
      _
    %357 = vsyncpa [#allocation3], 1
    %358 = vsyncpa [#allocation4], 1

</llo_original>
